<compile_context>
chip_gen: v7x
topology: tpu7x:2x2x1
jax: 0.10.0
libtpu: 0.0.40
codegen_flags: <defaults>
</compile_context>

<pallas_src>
import functools

import jax
import jax.numpy as jnp
from jax.experimental import pallas as pl
from jax.experimental.pallas import tpu as pltpu


def _round_up(x: int, m: int) -> int:
    return ((x + m - 1) // m) * m


# -----------------------------------------------------------------------------
# Kernels
# -----------------------------------------------------------------------------
def _matmul_bias_kernel(x_ref, w_ref, b_ref, o_ref, acc_ref):
    # x_ref: (tm, tk)  w_ref: (tk, tn)  b_ref: (1, tn)  o_ref: (tm, tn)
    k = pl.program_id(2)
    prod = jnp.dot(x_ref[...], w_ref[...], preferred_element_type=jnp.float32)

    @pl.when(k == 0)          # first K step: write directly (no zero-init pass)
    def _():
        acc_ref[...] = prod

    @pl.when(k != 0)
    def _():
        acc_ref[...] += prod

    @pl.when(k == pl.num_programs(2) - 1)
    def _():
        o_ref[...] = (acc_ref[...] + b_ref[...].astype(jnp.float32)).astype(
            o_ref.dtype
        )


def _matmul_kernel(x_ref, w_ref, o_ref, acc_ref):
    k = pl.program_id(2)
    prod = jnp.dot(x_ref[...], w_ref[...], preferred_element_type=jnp.float32)

    @pl.when(k == 0)
    def _():
        acc_ref[...] = prod

    @pl.when(k != 0)
    def _():
        acc_ref[...] += prod

    @pl.when(k == pl.num_programs(2) - 1)
    def _():
        o_ref[...] = acc_ref[...].astype(o_ref.dtype)


# -----------------------------------------------------------------------------
# Tile / grid planning (all static Python, runs at trace time)
# -----------------------------------------------------------------------------
@functools.lru_cache(maxsize=None)
def _device_kind() -> str:
    try:
        return jax.devices()[0].device_kind.lower()
    except Exception:  # pragma: no cover
        return ""


def _generation_preset():
    """(tm, tn, tk, vmem_limit_bytes, megacore) tuned per TPU generation."""
    kind = _device_kind()
    if "v7" in kind:
        # 64 MiB VMEM per TC, ~3.2 TB/s: ~310 FLOP/byte needed; 2 TCs/chip.
        return 512, 1024, 1024, 48 << 20, True
    if "v6" in kind:
        # 918 TF/s vs ~1.4 TB/s: big accumulator tile, 256-aligned N.
        return 1024, 2048, 1024, 96 << 20, False
    if "v5p" in kind or "v4" in kind:
        return 512, 1024, 1024, 96 << 20, True
    if "v5" in kind:
        # v5e: 512x512 saturates the roofline; spend VMEM on deeper K.
        return 512, 512, 2048, 96 << 20, False
    # Unknown / fallback: conservative but still well above 256x256.
    return 512, 1024, 1024, 64 << 20, False


def _plan(M: int, N: int, K: int):
    tm_p, tn_p, tk_p, vmem_limit, megacore = _generation_preset()

    # K (reduction): exact zeros required in any padding.  When K fits in one
    # tile, take it whole (full-dim block, no padding, single K step).
    if K <= tk_p:
        tk, K_pad = K, K
    else:
        tk = tk_p                       # multiple of 128 by construction
        K_pad = _round_up(K, tk)        # zero-pad only in this (rare) case

    # N (lane dim of output / transposed weight): whole dim if it fits.
    tn = N if N <= tn_p else tn_p

    # M: collapse small M so the weight streams from HBM exactly once.
    tm = M if M <= max(tm_p, 1024) else tm_p

    grid_m = pl.cdiv(M, tm)
    grid_n = pl.cdiv(N, tn)
    grid_k = K_pad // tk

    # Megacore (v7x / v4 / v5p): make sure both TensorCores get work on the
    # parallel axes; otherwise one core idles (straight 2x loss).
    if megacore and grid_m * grid_n < 2:
        if grid_m == 1 and M >= 16:
            tm = _round_up(pl.cdiv(M, 2), 8)
            grid_m = pl.cdiv(M, tm)
        elif grid_n == 1 and N >= 256:
            tn = _round_up(pl.cdiv(N, 2), 128)
            grid_n = pl.cdiv(N, tn)

    return tm, tn, tk, K_pad, grid_m, grid_n, grid_k, vmem_limit


# -----------------------------------------------------------------------------
# Public API
# -----------------------------------------------------------------------------
def pack_weight(weight):
    """One-time layout change (do this at init, NOT per forward call):
    (output_size, input_size) -> (input_size, output_size)."""
    return jnp.asarray(weight.T)


@functools.partial(jax.jit, static_argnames=("weight_is_transposed",))
def column_parallel_linear(x, weight, bias=None, *, weight_is_transposed=False):
    """y = x @ weight.T + bias  (F.linear semantics, world_size == 1).

    x:      (..., input_size)
    weight: (output_size, input_size)            if weight_is_transposed=False
            (input_size, output_size) pre-packed if weight_is_transposed=True
    bias:   (output_size,) or None
    """
    *lead, K = x.shape
    if weight_is_transposed:
        Kw, N = weight.shape
    else:
        N, Kw = weight.shape
    assert K == Kw, f"input_size mismatch: {K} vs {Kw}"

    M = 1
    for d in lead:
        M *= d
    x2d = x.reshape(M, K)

    out_dtype = jnp.result_type(x.dtype, weight.dtype)

    tm, tn, tk, K_pad, grid_m, grid_n, grid_k, vmem_limit = _plan(M, N, K)

    w_t = weight if weight_is_transposed else weight.T

    # Only the reduction dim ever gets padded (zero padding is exact for the
    # accumulation); M / N ragged edges are handled by Pallas block masking.
    if K_pad != K:
        x2d = jnp.pad(x2d, ((0, 0), (0, K_pad - K)))
        w_t = jnp.pad(w_t, ((0, K_pad - K), (0, 0)))

    grid = (grid_m, grid_n, grid_k)

    x_spec = pl.BlockSpec((tm, tk), lambda i, j, k: (i, k))
    w_spec = pl.BlockSpec((tk, tn), lambda i, j, k: (k, j))
    o_spec = pl.BlockSpec((tm, tn), lambda i, j, k: (i, j))

    x_size = jnp.dtype(x.dtype).itemsize
    w_size = jnp.dtype(weight.dtype).itemsize
    o_size = jnp.dtype(out_dtype).itemsize
    cost = pl.CostEstimate(
        flops=2 * M * N * K,
        transcendentals=0,
        bytes_accessed=(
            M * K * x_size * grid_n          # x re-read once per N block
            + K * N * w_size * grid_m        # weight re-read once per M block
            + M * N * o_size
        ),
    )

    compiler_params = pltpu.CompilerParams(
        dimension_semantics=("parallel", "parallel", "arbitrary"),
        vmem_limit_bytes=vmem_limit,
    )
    scratch = [pltpu.VMEM((tm, tn), jnp.float32)]
    out_shape = jax.ShapeDtypeStruct((M, N), out_dtype)

    if bias is not None:
        b2d = bias.reshape(1, N)
        b_spec = pl.BlockSpec((1, tn), lambda i, j, k: (0, j))
        y2d = pl.pallas_call(
            _matmul_bias_kernel,
            out_shape=out_shape,
            grid_spec=pltpu.PrefetchScalarGridSpec(
                num_scalar_prefetch=0,
                grid=grid,
                in_specs=[x_spec, w_spec, b_spec],
                out_specs=o_spec,
                scratch_shapes=scratch,
            ),
            compiler_params=compiler_params,
            cost_estimate=cost,
        )(x2d, w_t, b2d)
    else:
        y2d = pl.pallas_call(
            _matmul_kernel,
            out_shape=out_shape,
            grid_spec=pltpu.PrefetchScalarGridSpec(
                num_scalar_prefetch=0,
                grid=grid,
                in_specs=[x_spec, w_spec],
                out_specs=o_spec,
                scratch_shapes=scratch,
            ),
            compiler_params=compiler_params,
            cost_estimate=cost,
        )(x2d, w_t)

    return y2d.reshape(*lead, N)


def init_column_parallel_linear_params(key, input_size, output_size, dtype=jnp.float32):
    """Synthetic init mirroring the module's parameter shapes (world_size == 1):
    init_method emulated with normal(0, 0.02); bias zero-initialized."""
    (wkey,) = jax.random.split(key, 1)
    weight = 0.02 * jax.random.normal(wkey, (output_size, input_size), dtype=dtype)
    bias = jnp.zeros((output_size,), dtype=dtype)
    return weight, bias


if __name__ == "__main__":
    # Small shapes consistent with the module: (batch, seq, hidden) -> (batch, seq, out)
    batch, seq, input_size, output_size = 2, 8, 32, 64

    key = jax.random.PRNGKey(0)
    kx, kp = jax.random.split(key)
    x = jax.random.normal(kx, (batch, seq, input_size), dtype=jnp.float32)
    weight, bias = init_column_parallel_linear_params(kp, input_size, output_size)

    # Layout change hoisted out of the forward path (done once at "init" time).
    weight_t = pack_weight(weight)

    y_ref = x @ weight.T + bias

    # Module-native (N, K) weight layout.
    y = jax.block_until_ready(column_parallel_linear(x, weight, bias))
    assert y.shape == (batch, seq, output_size)
    assert jnp.allclose(y, y_ref, atol=1e-5, rtol=1e-5)

    # Pre-packed (K, N) weight layout (no per-call transpose in HBM).
    y_t = jax.block_until_ready(
        column_parallel_linear(x, weight_t, bias, weight_is_transposed=True)
    )
    assert jnp.allclose(y_t, y_ref, atol=1e-5, rtol=1e-5)

    # No-bias path.
    y_nb = jax.block_until_ready(column_parallel_linear(x, weight, None))
    assert jnp.allclose(y_nb, x @ weight.T, atol=1e-5, rtol=1e-5)

    # Ragged (non-tile-multiple) shapes: no M/N HBM padding, no output slice copy.
    x2 = jax.random.normal(jax.random.PRNGKey(1), (2, 5, 40), dtype=jnp.float32)
    w2, b2 = init_column_parallel_linear_params(jax.random.PRNGKey(2), 40, 72)
    y2 = jax.block_until_ready(column_parallel_linear(x2, w2, b2))
    assert y2.shape == (2, 5, 72)
    assert jnp.allclose(y2, x2 @ w2.T + b2, atol=1e-5, rtol=1e-5)

    print("KERNEL_OK")
</pallas_src>

<mosaic_0001>
module attributes {stable_mosaic.version = 11 : i64} {
  func.func @_matmul_bias_kernel(%arg0: i32, %arg1: i32, %arg2: i32, %arg3: memref<16x32xf32, #tpu.memory_space<vmem>>, %arg4: memref<32x64xf32, #tpu.memory_space<vmem>>, %arg5: memref<1x64xf32, #tpu.memory_space<vmem>>, %arg6: memref<16x64xf32, #tpu.memory_space<vmem>>, %arg7: memref<16x64xf32, #tpu.memory_space<vmem>>) attributes {dimension_semantics = [#tpu.dimension_semantics<parallel>, #tpu.dimension_semantics<parallel>, #tpu.dimension_semantics<arbitrary>], iteration_bounds = array<i64: 1, 1, 1>, scalar_prefetch = 0 : i64, scratch_operands = 1 : i64, tpu.core_type = #tpu.core_type<tc>, window_params = [{transform_indices = @transform_0, window_bounds = array<i64: 16, 32>}, {transform_indices = @transform_1, window_bounds = array<i64: 32, 64>}, {transform_indices = @transform_2, window_bounds = array<i64: 1, 64>}, {transform_indices = @transform_3, window_bounds = array<i64: 16, 64>}]} {
    %c0 = arith.constant 0 : index
    %c0_0 = arith.constant 0 : index
    %0 = vector.load %arg3[%c0, %c0_0] : memref<16x32xf32, #tpu.memory_space<vmem>>, vector<16x32xf32>
    %c0_1 = arith.constant 0 : index
    %c0_2 = arith.constant 0 : index
    %1 = vector.load %arg4[%c0_1, %c0_2] : memref<32x64xf32, #tpu.memory_space<vmem>>, vector<32x64xf32>
    %cst = arith.constant dense<0.000000e+00> : vector<16x64xf32>
    %2 = tpu.matmul %0, %1, %cst {dimension_numbers = #tpu.dot_dimension_numbers<[1], [0], [0], [1], [0, 0, 1, 1], [], []>} : vector<16x32xf32>, vector<32x64xf32>, vector<16x64xf32> -> vector<16x64xf32>
    %c0_i32 = arith.constant 0 : i32
    %3 = arith.cmpi eq, %arg2, %c0_i32 : i32
    %4 = arith.extui %3 : i1 to i32
    %c0_i32_3 = arith.constant 0 : i32
    %5 = arith.cmpi ne, %4, %c0_i32_3 : i32
    scf.if %5 {
      %c0_8 = arith.constant 0 : index
      %c0_9 = arith.constant 0 : index
      %12 = vector.load %arg7[%c0_8, %c0_9] : memref<16x64xf32, #tpu.memory_space<vmem>>, vector<16x64xf32>
      tpu.vector_store %arg7[%c0_8, %c0_9], %2 {strides = array<i32>} : memref<16x64xf32, #tpu.memory_space<vmem>>, vector<16x64xf32>,
    } else {
    }
    %c0_i32_4 = arith.constant 0 : i32
    %6 = arith.cmpi ne, %arg2, %c0_i32_4 : i32
    %7 = arith.extui %6 : i1 to i32
    %c0_i32_5 = arith.constant 0 : i32
    %8 = arith.cmpi ne, %7, %c0_i32_5 : i32
    scf.if %8 {
      %c0_8 = arith.constant 0 : index
      %c0_9 = arith.constant 0 : index
      %12 = vector.load %arg7[%c0_8, %c0_9] : memref<16x64xf32, #tpu.memory_space<vmem>>, vector<16x64xf32>
      %13 = arith.addf %12, %2 : vector<16x64xf32>
      %c0_10 = arith.constant 0 : index
      %c0_11 = arith.constant 0 : index
      %14 = vector.load %arg7[%c0_10, %c0_11] : memref<16x64xf32, #tpu.memory_space<vmem>>, vector<16x64xf32>
      tpu.vector_store %arg7[%c0_10, %c0_11], %13 {strides = array<i32>} : memref<16x64xf32, #tpu.memory_space<vmem>>, vector<16x64xf32>,
    } else {
    }
    %c0_i32_6 = arith.constant 0 : i32
    %9 = arith.cmpi eq, %arg2, %c0_i32_6 : i32
    %10 = arith.extui %9 : i1 to i32
    %c0_i32_7 = arith.constant 0 : i32
    %11 = arith.cmpi ne, %10, %c0_i32_7 : i32
    scf.if %11 {
      %c0_8 = arith.constant 0 : index
      %c0_9 = arith.constant 0 : index
      %12 = vector.load %arg7[%c0_8, %c0_9] : memref<16x64xf32, #tpu.memory_space<vmem>>, vector<16x64xf32>
      %c0_10 = arith.constant 0 : index
      %c0_11 = arith.constant 0 : index
      %13 = vector.load %arg5[%c0_10, %c0_11] : memref<1x64xf32, #tpu.memory_space<vmem>>, vector<1x64xf32>
      %14 = vector.broadcast %13 : vector<1x64xf32> to vector<16x64xf32>
      %15 = arith.addf %12, %14 : vector<16x64xf32>
      %c0_12 = arith.constant 0 : index
      %c0_13 = arith.constant 0 : index
      %16 = vector.load %arg6[%c0_12, %c0_13] : memref<16x64xf32, #tpu.memory_space<vmem>>, vector<16x64xf32>
      tpu.vector_store %arg6[%c0_12, %c0_13], %15 {strides = array<i32>} : memref<16x64xf32, #tpu.memory_space<vmem>>, vector<16x64xf32>,
    } else {
    }
    return
  }
  func.func @transform_0(%arg0: i32, %arg1: i32, %arg2: i32) -> (i32, i32) {
    %c0_i32 = arith.constant 0 : i32
    return %arg0, %arg2 : i32, i32
  }
  func.func @transform_1(%arg0: i32, %arg1: i32, %arg2: i32) -> (i32, i32) {
    %c0_i32 = arith.constant 0 : i32
    return %arg2, %arg1 : i32, i32
  }
  func.func @transform_2(%arg0: i32, %arg1: i32, %arg2: i32) -> (i32, i32) {
    %c0_i32 = arith.constant 0 : i32
    %c0_i32_0 = arith.constant 0 : i32
    return %c0_i32, %arg1 : i32, i32
  }
  func.func @transform_3(%arg0: i32, %arg1: i32, %arg2: i32) -> (i32, i32) {
    %c0_i32 = arith.constant 0 : i32
    return %arg0, %arg1 : i32, i32
  }
}

</mosaic_0001>

<llo_original>
// kernel: column_parallel_linear.1
$region0: #{column_parallel_linear.1}
  #allocation0 [shape = 'u32[]', space=smem, size = 0x4, offset = 0x4, fixed_abs, tag = 'smem constant byte address 0x4 - core index']
  #allocation1 [shape = 'u32[144,128]{1,0:T(1,128)}', space=vmem, size = 0x12000, scoped, tag = 'internal scratch']
  #allocation2 [shape = 'f32[16,64]{1,0:T(8,128)}', space=vmem, size = 0x2000, scoped, tag = 'scratch operand']
  %s0 = inlined_call_operand.hbm [shape: f32[16,32], index: 0, kind: input, shape index: {}]
  %s1 = inlined_call_operand.hbm [shape: f32[32,64], index: 1, kind: input, shape index: {}]
  %s2 = inlined_call_operand.hbm [shape: f32[1,64], index: 2, kind: input, shape index: {}]
  %s3 = inlined_call_operand.hbm [shape: f32[16,64], index: 3, kind: output, shape index: {}]
  %s4 = sld [smem:[#allocation0]]
  $region46: #{column_parallel_linear.1} parent=0
    _
  %s6 = ssub.s32 1, %s4
  %s7 = scalar_select 0, %s6, %s4
  $region1: #{column_parallel_linear.1} parent=0
    #allocation3 [shape = 'u8[8192]{0}', space=vmem, size = 0x2000, scoped, tag = 'input window, operand 0, single buffered']
    #allocation4 [shape = 's32[1]{0}', space=sflag, size = 0x4, scoped, tag = 'scoped memory for column_parallel_linear.1']
    #allocation5 [shape = 's32[1]{0}', space=sflag, size = 0x4, scoped, tag = 'scoped memory for column_parallel_linear.1']
    #allocation6 [shape = 'u8[16384]{0}', space=vmem, size = 0x4000, scoped, tag = 'input window, operand 1, single buffered']
    #allocation7 [shape = 's32[1]{0}', space=sflag, size = 0x4, scoped, tag = 'scoped memory for column_parallel_linear.1']
    #allocation8 [shape = 'u8[512]{0}', space=vmem, size = 0x400, scoped, tag = 'input window, operand 2, single buffered']
    #allocation9 [shape = 'u8[8192]{0}', space=vmem, size = 0x2000, scoped, tag = 'output window, operand 0, single buffered']
    %8 = vsyncpa [#allocation4], 0
    %9 = vsyncpa [#allocation7], 0
    %10 = vsyncpa [#allocation5], 0
    // Predicated region
    $region2: #{column_parallel_linear.1} parent=1 // pred_check
      _
    $region3: #{column_parallel_linear.1} parent=1 // pred_check_branch
      %12 = sbr.rel (0) target = $region5
    $region4: #{column_parallel_linear.1} parent=1 // pred_region
      %s14 = ssub.s32 256, 256
      %15 = vsyncadd [#allocation4], %s14
      %s16 = sshll.u32 [#allocation3], 4
      %s17 = int_to_ptr.vmem [resolvable:$true] %s16
      %22 = dma.hbm_to_vmem [thread:$0]  %s0, 256, %s17, [#allocation4], 128, 128, 8
    $region5: #{column_parallel_linear.1} parent=1 // pred_fallthru
      _
    // Predicated region
    $region6: #{column_parallel_linear.1} parent=1 // pred_check
      _
    $region7: #{column_parallel_linear.1} parent=1 // pred_check_branch
      %24 = sbr.rel (0) target = $region9
    $region8: #{column_parallel_linear.1} parent=1 // pred_region
      %s26 = ssub.s32 512, 512
      %27 = vsyncadd [#allocation7], %s26
      %s28 = sshll.u32 [#allocation6], 4
      %s29 = int_to_ptr.vmem [resolvable:$true] %s28
      %34 = dma.hbm_to_vmem [thread:$0]  %s1, 512, %s29, [#allocation7], 128, 128, 8
    $region9: #{column_parallel_linear.1} parent=1 // pred_fallthru
      _
    // Predicated region
    $region10: #{column_parallel_linear.1} parent=1 // pred_check
      _
    $region11: #{column_parallel_linear.1} parent=1 // pred_check_branch
      %36 = sbr.rel (0) target = $region13
    $region12: #{column_parallel_linear.1} parent=1 // pred_region
      %s38 = ssub.s32 16, 16
      %39 = vsyncadd [#allocation7], %s38
      %s41 = sshll.u32 [#allocation8], 4
      %s42 = int_to_ptr.vmem [resolvable:$true] %s41
      %44 = dma.hbm_to_vmem [thread:$0]  %s2, 16, %s42, [#allocation7]
    $region13: #{column_parallel_linear.1} parent=1 // pred_fallthru
      _
    // Predicated region
    $region14: #{column_parallel_linear.1} parent=1 // pred_check
      _
    $region15: #{column_parallel_linear.1} parent=1 // pred_check_branch
      %46 = sbr.rel (0) target = $region17
    $region16: #{column_parallel_linear.1} parent=1 // pred_region
      %47 = dma.done [#allocation4], 256
    $region17: #{column_parallel_linear.1} parent=1 // pred_fallthru
      _
    // Predicated region
    $region18: #{column_parallel_linear.1} parent=1 // pred_check
      _
    $region19: #{column_parallel_linear.1} parent=1 // pred_check_branch
      %49 = sbr.rel (0) target = $region21
    $region20: #{column_parallel_linear.1} parent=1 // pred_region
      %50 = dma.done [#allocation7], 512
    $region21: #{column_parallel_linear.1} parent=1 // pred_fallthru
      _
    // Predicated region
    $region22: #{column_parallel_linear.1} parent=1 // pred_check
      _
    $region23: #{column_parallel_linear.1} parent=1 // pred_check_branch
      %52 = sbr.rel (0) target = $region25
    $region24: #{column_parallel_linear.1} parent=1 // pred_region
      %53 = dma.done [#allocation7], 16
    $region25: #{column_parallel_linear.1} parent=1 // pred_fallthru
      _
    %v54 = vld [vmem:[#allocation3] sm:$0xff]
    %v55 = vld [vmem:[#allocation3 + $0x8] sm:$0xff]
    %v56 = vld [vmem:[#allocation6] sm:$0xff]
    %v57 = vld [vmem:[#allocation6 + $0x8] sm:$0xff]
    %v58 = vld [vmem:[#allocation6 + $0x10] sm:$0xff]
    %v59 = vld [vmem:[#allocation6 + $0x18] sm:$0xff]
    %vm60 = vcmask 261120
    %v62 = vsel %vm60, %v54, 0
    %v65 = vsel %vm60, %v55, 0
    %67 = vmatprep.subr.mxu0 0.0
    %68 = vmatpush1.msra.mxu0 %v56
    %69 = vmatprep.subr.mxu0 0.0
    %70 = vmatpush1.msra.mxu0 %v57
    %71 = vmatprep.subr.mxu0 0.0
    %72 = vmatpush1.msra.mxu0 %v58
    %73 = vmatprep.subr.mxu0 0.0
    %74 = vmatpush1.msra.mxu0 %v59
    %75 = vmatprep.subr.mxu0 0.0
    %76 = vmatpush1.msra.mxu0 0.0
    %77 = vmatprep.subr.mxu0 0.0
    %78 = vmatpush1.msra.mxu0 0.0
    %79 = vmatprep.subr.mxu0 0.0
    %80 = vmatpush1.msra.mxu0 0.0
    %81 = vmatprep.subr.mxu0 0.0
    %82 = vmatpush1.msra.mxu0 0.0
    %83 = vmatprep.subr.mxu0 0.0
    %84 = vmatpush1.msra.mxu0 0.0
    %85 = vmatprep.subr.mxu0 0.0
    %86 = vmatpush1.msra.mxu0 0.0
    %87 = vmatprep.subr.mxu0 0.0
    %88 = vmatpush1.msra.mxu0 0.0
    %89 = vmatprep.subr.mxu0 0.0
    %90 = vmatpush1.msra.mxu0 0.0
    %91 = vmatprep.subr.mxu0 0.0
    %92 = vmatpush1.msra.mxu0 0.0
    %93 = vmatprep.subr.mxu0 0.0
    %94 = vmatpush1.msra.mxu0 0.0
    %95 = vmatprep.subr.mxu0 0.0
    %96 = vmatpush1.msra.mxu0 0.0
    %97 = vmatprep.subr.mxu0 0.0
    %98 = vmatpush1.msra.mxu0 0.0
    %99 = vmatprep.subr.mxu0 0.0
    %100 = vmatpush1.msra.mxu0 0.0
    %101 = vmatprep.subr.mxu0 0.0
    %102 = vmatpush1.msra.mxu0 0.0
    %103 = vmatprep.subr.mxu0 0.0
    %104 = vmatpush1.msra.mxu0 0.0
    %105 = vmatprep.subr.mxu0 0.0
    %106 = vmatpush1.msra.mxu0 0.0
    %107 = vmatprep.subr.mxu0 0.0
    %108 = vmatpush1.msra.mxu0 0.0
    %109 = vmatprep.subr.mxu0 0.0
    %110 = vmatpush1.msra.mxu0 0.0
    %111 = vmatprep.subr.mxu0 0.0
    %112 = vmatpush1.msra.mxu0 0.0
    %113 = vmatprep.subr.mxu0 0.0
    %114 = vmatpush1.msra.mxu0 0.0
    %115 = vmatprep.subr.mxu0 0.0
    %116 = vmatpush1.msra.mxu0 0.0
    %117 = vmatprep.subr.mxu0 0.0
    %118 = vmatpush1.msra.mxu0 0.0
    %119 = vmatprep.subr.mxu0 0.0
    %120 = vmatpush1.msra.mxu0 0.0
    %121 = vmatprep.subr.mxu0 0.0
    %122 = vmatpush1.msra.mxu0 0.0
    %123 = vmatprep.subr.mxu0 0.0
    %124 = vmatpush1.msra.mxu0 0.0
    %125 = vmatprep.subr.mxu0 0.0
    %126 = vmatpush1.msra.mxu0 0.0
    %127 = vmatprep.subr.mxu0 0.0
    %128 = vmatpush1.msra.mxu0 0.0
    %129 = vmatprep.subr.mxu0 0.0
    %130 = vmatpush1.msra.mxu0 0.0
    %131 = vmatprep.mubr.f32.mxu0 0.0
    %132 = vmatmul.mubr.f32.gmra.mrb[0].mxu0 %v62
    %v133 = vpop.f32.mrb[0].mxu0
    %v134 = vadd.f32 0.0, %v133
    %v135 = vpop.f32.mrb[0].mxu0
    %136 = vmatprep.mubr.f32.mxu0 0.0
    %137 = vmatmul.mubr.f32.gmra.mrb[0].mxu0 %v65
    %v138 = vpop.f32.mrb[0].mxu0
    %v139 = vadd.f32 0.0, %v138
    %v140 = vpop.f32.mrb[0].mxu0
    %141 = vdwg.mxu0
    %p142 = scmp.eq.s32.totalorder 0, 0
    // Predicated region
    $region26: #{column_parallel_linear.1} parent=1 // pred_check
      %p143 = pneg %p142
    $region27: #{column_parallel_linear.1} parent=1 // pred_check_branch
      %145 = sbr.rel (%p143) target = $region29
    $region28: #{column_parallel_linear.1} parent=1 // pred_region
      %vm146 = vcmask 523264
      %147 = vst.msk [vmem:[#allocation2] sm:$0xff] %vm146, %v134
      %148 = vst.msk [vmem:[#allocation2 + $0x8] sm:$0xff] %vm146, %v139
    $region29: #{column_parallel_linear.1} parent=1 // pred_fallthru
      _
    %p149 = scmp.ne.s32.totalorder 0, 0
    // Predicated region
    $region30: #{column_parallel_linear.1} parent=1 // pred_check
      %p150 = pneg %p149
    $region31: #{column_parallel_linear.1} parent=1 // pred_check_branch
      %152 = sbr.rel (%p150) target = $region33
    $region32: #{column_parallel_linear.1} parent=1 // pred_region
      %v153 = vld [vmem:[#allocation2] sm:$0xff]
      %v154 = vld [vmem:[#allocation2 + $0x8] sm:$0xff]
      %v155 = vadd.f32 %v153, %v134
      %v156 = vadd.f32 %v154, %v139
      %vm157 = vcmask 523264
      %158 = vst.msk [vmem:[#allocation2] sm:$0xff] %vm157, %v155
      %159 = vst.msk [vmem:[#allocation2 + $0x8] sm:$0xff] %vm157, %v156
    $region33: #{column_parallel_linear.1} parent=1 // pred_fallthru
      _
    // Predicated region
    $region34: #{column_parallel_linear.1} parent=1 // pred_check
      %p160 = pneg %p142
    $region35: #{column_parallel_linear.1} parent=1 // pred_check_branch
      %162 = sbr.rel (%p160) target = $region37
    $region36: #{column_parallel_linear.1} parent=1 // pred_region
      %v163 = vld [vmem:[#allocation2] sm:$0xff]
      %v164 = vld [vmem:[#allocation2 + $0x8] sm:$0xff]
      %v165 = vld [vmem:[#allocation8] sm:$0x1]
      %v167 = vlaneseq
      %v168 = vshrl.u32 %v167, 7
      %v169 = vsub.s32 0, %v168
      %v170 = vrot.slane %v165, %v169
      %v172 = vadd.f32 %v163, %v170
      %v173 = vadd.f32 %v164, %v170
      %vm174 = vcmask 523264
      %175 = vst.msk [vmem:[#allocation9] sm:$0xff] %vm174, %v172
      %176 = vst.msk [vmem:[#allocation9 + $0x8] sm:$0xff] %vm174, %v173
    $region37: #{column_parallel_linear.1} parent=1 // pred_fallthru
      _
    // Predicated region
    $region38: #{column_parallel_linear.1} parent=1 // pred_check
      _
    $region39: #{column_parallel_linear.1} parent=1 // pred_check_branch
      %178 = sbr.rel (0) target = $region41
    $region40: #{column_parallel_linear.1} parent=1 // pred_region
      %s180 = ssub.s32 256, 256
      %181 = vsyncadd [#allocation5], %s180
      %s182 = sshll.u32 [#allocation9], 4
      %s183 = int_to_ptr.vmem [resolvable:$true] %s182
      %188 = dma.vmem_to_hbm [thread:$0]  %s183, 256, %s3, [#allocation5], 128, 128, 8
    $region41: #{column_parallel_linear.1} parent=1 // pred_fallthru
      _
    // Predicated region
    $region42: #{column_parallel_linear.1} parent=1 // pred_check
      _
    $region43: #{column_parallel_linear.1} parent=1 // pred_check_branch
      %190 = sbr.rel (0) target = $region45
    $region44: #{column_parallel_linear.1} parent=1 // pred_region
      %191 = dma.done [#allocation5], 256
    $region45: #{column_parallel_linear.1} parent=1 // pred_fallthru
      _
    %192 = vsyncpa [#allocation4], 1
    %193 = vsyncpa [#allocation7], 1
    %194 = vsyncpa [#allocation5], 1

</llo_original>
